<compile_context>
chip_gen: v5e
topology: v5e:2x2
jax: 0.10.0
libtpu: 0.0.40
codegen_flags: <defaults>
</compile_context>

<pallas_src>
import jax
import jax.numpy as jnp
from jax.experimental import pallas as pl
from jax.experimental.pallas import tpu as pltpu

IN_FEATURES = 128
OUT_FEATURES = 256


def linear_kernel(x_ref, w_ref, b_ref, o_ref):
    # Single-tile matmul on the MXU with f32 accumulation, bias add on the VPU.
    acc = jnp.dot(x_ref[...], w_ref[...], preferred_element_type=jnp.float32)
    o_ref[...] = (acc + b_ref[...]).astype(o_ref.dtype)


def _round_up(x, m):
    return ((x + m - 1) // m) * m


def linear(x, w_t, b, *, tm_max=2048, min_pallas_m=256):
    """x: (M, K) f32, w_t: (K, N) f32 (already transposed), b: (1, N) f32."""
    M, K = x.shape
    K2, N = w_t.shape
    assert K == K2 and b.shape == (1, N)

    # Tiny batches: a standalone pallas_call is pure launch + DMA fixed cost;
    # let XLA fuse the matmul into the surrounding graph instead.
    if M < min_pallas_m:
        return x @ w_t + b

    # Sublane-aligned M tile; keep >= 2 grid steps so v7x's two TensorCores can
    # each take a share of the "parallel" M axis, capped at tm_max for VMEM.
    tm = min(tm_max, _round_up(pl.cdiv(M, 2), 8))
    grid = (pl.cdiv(M, tm),)  # ragged last tile handled by Pallas masking

    cost = pl.CostEstimate(
        flops=2 * M * K * N,
        transcendentals=0,
        bytes_accessed=4 * (M * K + K * N + M * N + N),
    )

    return pl.pallas_call(
        linear_kernel,
        out_shape=jax.ShapeDtypeStruct((M, N), x.dtype),
        grid_spec=pltpu.PrefetchScalarGridSpec(
            num_scalar_prefetch=0,
            grid=grid,
            in_specs=[
                pl.BlockSpec((tm, K), lambda i: (i, 0)),   # streamed x tiles
                pl.BlockSpec((K, N), lambda i: (0, 0)),    # weight stays resident
                pl.BlockSpec((1, N), lambda i: (0, 0)),    # bias stays resident
            ],
            out_specs=pl.BlockSpec((tm, N), lambda i: (i, 0)),
        ),
        compiler_params=pltpu.CompilerParams(
            dimension_semantics=("parallel",),             # megacore-shardable on v7x
        ),
        cost_estimate=cost,
    )(x, w_t, b)


if __name__ == "__main__":
    key = jax.random.PRNGKey(0)
    kx, kw, kb, kx2, kx3 = jax.random.split(key, 5)

    # Deterministic parameter init mimicking nn.Linear's uniform(-1/sqrt(K), 1/sqrt(K)).
    bound = 1.0 / (IN_FEATURES ** 0.5)
    weight = jax.random.uniform(
        kw, (OUT_FEATURES, IN_FEATURES), minval=-bound, maxval=bound,
        dtype=jnp.float32)                         # PyTorch layout (out, in)
    bias = jax.random.uniform(
        kb, (OUT_FEATURES,), minval=-bound, maxval=bound, dtype=jnp.float32)

    w_t = weight.T                                 # (K, N) for the kernel
    b2d = bias.reshape(1, OUT_FEATURES)            # (1, N) lane-dense bias

    # 1) Small batch consistent with the module's expected use (fused XLA path).
    batch = 8
    x = jax.random.normal(kx, (batch, IN_FEATURES), dtype=jnp.float32)
    y = jax.block_until_ready(linear(x, w_t, b2d))
    y_ref = x @ weight.T + bias
    assert y.shape == (batch, OUT_FEATURES)
    assert jnp.allclose(y, y_ref, atol=1e-5, rtol=1e-5)

    # 2) Ragged batch -> Pallas path: tm=504, grid=(2,), masked partial tile,
    #    no pad/slice round-trip.
    batch2 = 1000
    x2 = jax.random.normal(kx2, (batch2, IN_FEATURES), dtype=jnp.float32)
    y2 = jax.block_until_ready(linear(x2, w_t, b2d))
    y2_ref = x2 @ weight.T + bias
    assert y2.shape == (batch2, OUT_FEATURES)
    assert jnp.allclose(y2, y2_ref, atol=1e-5, rtol=1e-5)

    # 3) Larger batch -> hits tm_max=2048, grid=(3,), ragged 4-row tail.
    batch3 = 4100
    x3 = jax.random.normal(kx3, (batch3, IN_FEATURES), dtype=jnp.float32)
    y3 = jax.block_until_ready(linear(x3, w_t, b2d))
    y3_ref = x3 @ weight.T + bias
    assert y3.shape == (batch3, OUT_FEATURES)
    assert jnp.allclose(y3, y3_ref, atol=1e-5, rtol=1e-5)

    print("KERNEL_OK")
</pallas_src>

<mosaic_0001>
module attributes {stable_mosaic.version = 11 : i64} {
  func.func @linear_kernel(%arg0: i32, %arg1: memref<504x128xf32, #tpu.memory_space<vmem>>, %arg2: memref<128x256xf32, #tpu.memory_space<vmem>>, %arg3: memref<1x256xf32, #tpu.memory_space<vmem>>, %arg4: memref<504x256xf32, #tpu.memory_space<vmem>>) attributes {dimension_semantics = [#tpu.dimension_semantics<parallel>], iteration_bounds = array<i64: 2>, scalar_prefetch = 0 : i64, scratch_operands = 0 : i64, tpu.core_type = #tpu.core_type<tc>, window_params = [{transform_indices = @transform_0, window_bounds = array<i64: 504, 128>}, {pipeline_mode = #tpu.pipeline_mode<synchronous>, transform_indices = @transform_1, window_bounds = array<i64: 128, 256>}, {pipeline_mode = #tpu.pipeline_mode<synchronous>, transform_indices = @transform_2, window_bounds = array<i64: 1, 256>}, {transform_indices = @transform_3, window_bounds = array<i64: 504, 256>}]} {
    %c0 = arith.constant 0 : index
    %c0_0 = arith.constant 0 : index
    %0 = vector.load %arg1[%c0, %c0_0] : memref<504x128xf32, #tpu.memory_space<vmem>>, vector<504x128xf32>
    %c0_1 = arith.constant 0 : index
    %c0_2 = arith.constant 0 : index
    %1 = vector.load %arg2[%c0_1, %c0_2] : memref<128x256xf32, #tpu.memory_space<vmem>>, vector<128x256xf32>
    %cst = arith.constant dense<0.000000e+00> : vector<504x256xf32>
    %2 = tpu.matmul %0, %1, %cst {dimension_numbers = #tpu.dot_dimension_numbers<[1], [0], [0], [1], [0, 0, 1, 1], [], []>} : vector<504x128xf32>, vector<128x256xf32>, vector<504x256xf32> -> vector<504x256xf32>
    %c0_3 = arith.constant 0 : index
    %c0_4 = arith.constant 0 : index
    %3 = vector.load %arg3[%c0_3, %c0_4] : memref<1x256xf32, #tpu.memory_space<vmem>>, vector<1x256xf32>
    %4 = vector.broadcast %3 : vector<1x256xf32> to vector<504x256xf32>
    %5 = arith.addf %2, %4 : vector<504x256xf32>
    %c0_5 = arith.constant 0 : index
    %c0_6 = arith.constant 0 : index
    %6 = vector.load %arg4[%c0_5, %c0_6] : memref<504x256xf32, #tpu.memory_space<vmem>>, vector<504x256xf32>
    tpu.vector_store %arg4[%c0_5, %c0_6], %5 {strides = array<i32>} : memref<504x256xf32, #tpu.memory_space<vmem>>, vector<504x256xf32>,
    return
  }
  func.func @transform_0(%arg0: i32) -> (i32, i32) {
    %c0_i32 = arith.constant 0 : i32
    %c0_i32_0 = arith.constant 0 : i32
    return %arg0, %c0_i32 : i32, i32
  }
  func.func @transform_1(%arg0: i32) -> (i32, i32) {
    %c0_i32 = arith.constant 0 : i32
    %c0_i32_0 = arith.constant 0 : i32
    %c0_i32_1 = arith.constant 0 : i32
    return %c0_i32, %c0_i32_0 : i32, i32
  }
  func.func @transform_2(%arg0: i32) -> (i32, i32) {
    %c0_i32 = arith.constant 0 : i32
    %c0_i32_0 = arith.constant 0 : i32
    %c0_i32_1 = arith.constant 0 : i32
    return %c0_i32, %c0_i32_0 : i32, i32
  }
  func.func @transform_3(%arg0: i32) -> (i32, i32) {
    %c0_i32 = arith.constant 0 : i32
    %c0_i32_0 = arith.constant 0 : i32
    return %arg0, %c0_i32 : i32, i32
  }
}

</mosaic_0001>

<llo_original>
// kernel: tpu_custom_call.1
$region0: #{tpu_custom_call.1}
  #allocation0 [shape = 'u32[]', space=smem, size = 0x4, offset = 0x4, fixed_abs, tag = 'smem constant byte address 0x4 - core index']
  #allocation1 [shape = 'u32[72,128]{1,0:T(1,128)}', space=vmem, size = 0x9000, scoped, tag = 'internal scratch']
  %s0 = inlined_call_operand.hbm [shape: f32[1000,128], index: 0, kind: input, shape index: {}]
  %s1 = inlined_call_operand.hbm [shape: f32[128,256], index: 1, kind: input, shape index: {}]
  %s2 = inlined_call_operand.hbm [shape: f32[1,256], index: 2, kind: input, shape index: {}]
  %s3 = inlined_call_operand.hbm [shape: f32[1000,256], index: 3, kind: output, shape index: {}]
  %s4 = sld [smem:[#allocation0]]
  $region57: #{tpu_custom_call.1} parent=0
    _
  %s6 = ssub.s32 1, %s4
  %s7 = scalar_select 0, %s6, %s4
  $region1: #{tpu_custom_call.1} parent=0
    #allocation2 [shape = 'u8[516096]{0}', space=vmem, size = 0x7e000, scoped, tag = 'input window, operand 0']
    #allocation3 [shape = 's32[2]{0}', space=sflag, size = 0x8, scoped, tag = 'scoped memory for tpu_custom_call.1']
    #allocation4 [shape = 's32[2]{0}', space=sflag, size = 0x8, scoped, tag = 'scoped memory for tpu_custom_call.1']
    #allocation5 [shape = 'u8[131072]{0}', space=vmem, size = 0x20000, scoped, tag = 'input window, operand 1, single buffered']
    #allocation6 [shape = 's32[1]{0}', space=sflag, size = 0x4, scoped, tag = 'scoped memory for tpu_custom_call.1']
    #allocation7 [shape = 'u8[1024]{0}', space=vmem, size = 0x400, scoped, tag = 'input window, operand 2, single buffered']
    #allocation8 [shape = 'u8[1032192]{0}', space=vmem, size = 0xfc000, scoped, tag = 'output window, operand 0']
    %8 = vsyncpa [#allocation3], 0
    %s9 = scalar_lea.sflag [#allocation3], 1
    %10 = vsyncpa %s9, 0
    %11 = vsyncpa [#allocation6], 0
    %12 = vsyncpa [#allocation4], 0
    %s13 = scalar_lea.sflag [#allocation4], 1
    %14 = vsyncpa %s13, 0
    loop: start=0, step=1, limit=4
    $region2: #{tpu_custom_call.1} parent=1 // loop_pre_header
      _
    $region3: #{tpu_custom_call.1} parent=1 // loop_header
      %s16 = sphi 0, %s20
      %p17 = scmp.ge.s32.totalorder %s16, 4
      %s26 = sphi 0, %s28
      %s29 = sphi 0, %s26
      %s30 = sphi 0, %s29
      %s46 = sphi 0, %s30
      %s50 = sphi 0, %s50
      %s52 = sphi 0, %s50
      %s53 = sphi 0, %s52
      %s67 = sphi 0, %s53
      %s71 = sphi 0, %s71
      %s73 = sphi 0, %s71
      %s74 = sphi 0, %s73
      %s88 = sphi 0, %s74
      %s94 = sphi 0, %s96
      %s97 = sphi 0, %s94
      %s98 = sphi 0, %s97
      %s114 = sphi 0, %s98
    $region4: #{tpu_custom_call.1} parent=1 // loop_header_branch
      %19 = sbr.rel (%p17) target = $region8
    $region5: #{tpu_custom_call.1} parent=1 // loop_body
      %s21 = ssub.s32 %s16, 1
      %s22 = ssub.s32 %s16, 2
      %s23 = sadd.s32 %s16, 1
      %s24 = ssub.s32 %s16, %s23
      %p25 = scmp.eq.s32.totalorder %s24, 0
      %s27 = sadd.s32 %s26, 1
      %s28 = scalar_select %p25, %s26, %s27
      %p31 = pneg %p25
      %p32 = scmp.eq.s32.totalorder %s16, 1
      %p33 = por %p31, %p32
      %p34 = scmp.ne.s32.totalorder %s26, %s29
      %p35 = scmp.eq.s32.totalorder %s16, 0
      %p36 = por %p34, %p35
      %p37 = scmp.ne.s32.totalorder %s26, %s29
      %p38 = scmp.eq.s32.totalorder %s21, 1
      %p39 = por %p37, %p38
      %p40 = scmp.ne.s32.totalorder %s29, %s30
      %p41 = scmp.eq.s32.totalorder %s21, 0
      %p42 = por %p40, %p41
      %p43 = scmp.ne.s32.totalorder %s29, %s30
      %p44 = scmp.eq.s32.totalorder %s22, 1
      %p45 = por %p43, %p44
      %p47 = scmp.ne.s32.totalorder %s30, %s46
      %p48 = scmp.eq.s32.totalorder %s22, 0
      %p49 = por %p47, %p48
      %s51 = sadd.s32 %s50, 1
      %p54 = scmp.eq.s32.totalorder %s16, 1
      %p55 = scmp.ne.s32.totalorder %s50, %s52
      %p56 = scmp.eq.s32.totalorder %s16, 0
      %p57 = por %p55, %p56
      %p58 = scmp.ne.s32.totalorder %s50, %s52
      %p59 = scmp.eq.s32.totalorder %s21, 1
      %p60 = por %p58, %p59
      %p61 = scmp.ne.s32.totalorder %s52, %s53
      %p62 = scmp.eq.s32.totalorder %s21, 0
      %p63 = por %p61, %p62
      %p64 = scmp.ne.s32.totalorder %s52, %s53
      %p65 = scmp.eq.s32.totalorder %s22, 1
      %p66 = por %p64, %p65
      %p68 = scmp.ne.s32.totalorder %s53, %s67
      %p69 = scmp.eq.s32.totalorder %s22, 0
      %p70 = por %p68, %p69
      %s72 = sadd.s32 %s71, 1
      %p75 = scmp.eq.s32.totalorder %s16, 1
      %p76 = scmp.ne.s32.totalorder %s71, %s73
      %p77 = scmp.eq.s32.totalorder %s16, 0
      %p78 = por %p76, %p77
      %p79 = scmp.ne.s32.totalorder %s71, %s73
      %p80 = scmp.eq.s32.totalorder %s21, 1
      %p81 = por %p79, %p80
      %p82 = scmp.ne.s32.totalorder %s73, %s74
      %p83 = scmp.eq.s32.totalorder %s21, 0
      %p84 = por %p82, %p83
      %p85 = scmp.ne.s32.totalorder %s73, %s74
      %p86 = scmp.eq.s32.totalorder %s22, 1
      %p87 = por %p85, %p86
      %p89 = scmp.ne.s32.totalorder %s74, %s88
      %p90 = scmp.eq.s32.totalorder %s22, 0
      %p91 = por %p89, %p90
      %s92 = ssub.s32 %s16, %s23
      %p93 = scmp.eq.s32.totalorder %s92, 0
      %s95 = sadd.s32 %s94, 1
      %s96 = scalar_select %p93, %s94, %s95
      %p99 = pneg %p93
      %p100 = scmp.eq.s32.totalorder %s16, 1
      %p101 = por %p99, %p100
      %p102 = scmp.ne.s32.totalorder %s94, %s97
      %p103 = scmp.eq.s32.totalorder %s16, 0
      %p104 = por %p102, %p103
      %p105 = scmp.ne.s32.totalorder %s94, %s97
      %p106 = scmp.eq.s32.totalorder %s21, 1
      %p107 = por %p105, %p106
      %p108 = scmp.ne.s32.totalorder %s97, %s98
      %p109 = scmp.eq.s32.totalorder %s21, 0
      %p110 = por %p108, %p109
      %p111 = scmp.ne.s32.totalorder %s97, %s98
      %p112 = scmp.eq.s32.totalorder %s22, 1
      %p113 = por %p111, %p112
      %p115 = scmp.ne.s32.totalorder %s98, %s114
      %p116 = scmp.eq.s32.totalorder %s22, 0
      %p117 = por %p115, %p116
      %p118 = scmp.le.s32.totalorder 1, %s16
      %p119 = scmp.lt.s32.totalorder %s16, 3
      %p120 = pnand %p118, %p119
      %p121 = pneg %p120
      // Predicated region
      $region9: #{tpu_custom_call.1} parent=5 // pred_check
        _
      $region10: #{tpu_custom_call.1} parent=5 // pred_check_branch
        %123 = sbr.rel (%p120) target = $region12
      $region11: #{tpu_custom_call.1} parent=5 // pred_region
        %s124 = ssub.s32 %s16, 1
        // Predicated region
        $region13: #{tpu_custom_call.1} parent=11 // pred_check
          %p125 = pneg %p63
        $region14: #{tpu_custom_call.1} parent=11 // pred_check_branch
          %127 = sbr.rel (%p125) target = $region16
        $region15: #{tpu_custom_call.1} parent=11 // pred_region
          %129 = vsyncadd [#allocation6], 0
          %s130 = sshll.u32 %s1, 4
          %s131 = int_to_ptr.hbm [resolvable:$true] %s130
          %s132 = sshll.u32 [#allocation5], 4
          %s133 = int_to_ptr.vmem [resolvable:$true] %s132
          %138 = dma.hbm_to_vmem [thread:$0]  %s131, 4096, %s133, [#allocation6], 256, 256, 16
        $region16: #{tpu_custom_call.1} parent=11 // pred_fallthru
          _
        // Predicated region
        $region17: #{tpu_custom_call.1} parent=11 // pred_check
          %p139 = pneg %p84
        $region18: #{tpu_custom_call.1} parent=11 // pred_check_branch
          %141 = sbr.rel (%p139) target = $region20
        $region19: #{tpu_custom_call.1} parent=11 // pred_region
          %143 = vsyncadd [#allocation6], 0
          %s145 = sshll.u32 %s2, 4
          %s146 = int_to_ptr.hbm [resolvable:$true] %s145
          %s147 = sshll.u32 [#allocation7], 4
          %s148 = int_to_ptr.vmem [resolvable:$true] %s147
          %150 = dma.hbm_to_vmem [thread:$0]  %s146, 32, %s148, [#allocation6]
        $region20: #{tpu_custom_call.1} parent=11 // pred_fallthru
          _
      $region12: #{tpu_custom_call.1} parent=5 // pred_fallthru
        _
      %p151 = scmp.lt.s32.totalorder %s16, 2
      // Predicated region
      $region21: #{tpu_custom_call.1} parent=5 // pred_check
        %p152 = pneg %p151
      $region22: #{tpu_custom_call.1} parent=5 // pred_check_branch
        %154 = sbr.rel (%p152) target = $region24
      $region23: #{tpu_custom_call.1} parent=5 // pred_region
        // Predicated region
        $region25: #{tpu_custom_call.1} parent=23 // pred_check
          %p155 = pneg %p36
        $region26: #{tpu_custom_call.1} parent=23 // pred_check_branch
          %157 = sbr.rel (%p155) target = $region28
        $region27: #{tpu_custom_call.1} parent=23 // pred_region
          %s158 = sand.u32 %s26, 1
          %s159 = scalar_lea.sflag [#allocation3], %s158
          %s160 = sand.u32 %s26, 1
          %s161 = smul.addr %s160, 504
          %s162 = scalar_lea.vmem [#allocation2], %s161
          %s163 = smul.u32 63, %s16
          %s164 = ssub.s32 125, %s163
          %p165 = scmp.lt.s32.totalorder %s164, 63
          %s166 = scalar_select %p165, %s164, 63
          %s167 = smul.u32 8, %s166
          %s168 = ssub.s32 504, %s167
          %s169 = sshll.u32 %s168, 4
          %170 = vsyncadd %s159, %s169
          %p171 = scmp.ne.s32.totalorder 0, %s167
          %s172 = smul.addr %s163, 8
          %s173 = scalar_lea.hbm %s0, %s172
          %s174 = smul.u32 8, %s166
          %s175 = sshll.u32 %s173, 4
          %s176 = int_to_ptr.hbm [resolvable:$true] %s175
          %s177 = sshll.u32 %s162, 4
          %s178 = int_to_ptr.vmem [resolvable:$true] %s177
          %s179 = sshll.u32 %s174, 4
          %183 = dma.hbm_to_vmem [thread:$0]  (%p171), %s176, %s179, %s178, %s159, 128, 128, 8
        $region28: #{tpu_custom_call.1} parent=23 // pred_fallthru
          _
      $region24: #{tpu_custom_call.1} parent=5 // pred_fallthru
        _
      %p184 = scmp.le.s32.totalorder 1, %s16
      %p185 = scmp.lt.s32.totalorder %s16, 3
      %p186 = pnand %p184, %p185
      %p187 = pneg %p186
      // Predicated region
      $region29: #{tpu_custom_call.1} parent=5 // pred_check
        _
      $region30: #{tpu_custom_call.1} parent=5 // pred_check_branch
        %189 = sbr.rel (%p186) target = $region32
      $region31: #{tpu_custom_call.1} parent=5 // pred_region
        %s190 = ssub.s32 %s16, 1
        %s191 = sand.u32 %s29, 1
        %s192 = scalar_lea.sflag [#allocation3], %s191
        %s193 = sand.u32 %s29, 1
        %s194 = smul.addr %s193, 504
        %s195 = scalar_lea.vmem [#allocation2], %s194
        // Predicated region
        $region33: #{tpu_custom_call.1} parent=31 // pred_check
          %p196 = pneg %p42
        $region34: #{tpu_custom_call.1} parent=31 // pred_check_branch
          %198 = sbr.rel (%p196) target = $region36
        $region35: #{tpu_custom_call.1} parent=31 // pred_region
          %200 = dma.done %s192, 8064
        $region36: #{tpu_custom_call.1} parent=31 // pred_fallthru
          _
        // Predicated region
        $region37: #{tpu_custom_call.1} parent=31 // pred_check
          %p201 = pneg %p63
        $region38: #{tpu_custom_call.1} parent=31 // pred_check_branch
          %203 = sbr.rel (%p201) target = $region40
        $region39: #{tpu_custom_call.1} parent=31 // pred_region
          %205 = dma.done [#allocation6], 4096
        $region40: #{tpu_custom_call.1} parent=31 // pred_fallthru
          _
        // Predicated region
        $region41: #{tpu_custom_call.1} parent=31 // pred_check
          %p206 = pneg %p84
        $region42: #{tpu_custom_call.1} parent=31 // pred_check_branch
          %208 = sbr.rel (%p206) target = $region44
        $region43: #{tpu_custom_call.1} parent=31 // pred_region
          %210 = dma.done [#allocation6], 32
        $region44: #{tpu_custom_call.1} parent=31 // pred_fallthru
          _
        %s211 = sand.u32 %s29, 1
        %s212 = scalar_lea.sflag [#allocation3], %s211
        %s213 = sand.u32 %s29, 1
        %s214 = smul.addr %s213, 504
        %s215 = scalar_lea.vmem [#allocation2], %s214
        %p216 = pneg %p42
        %p217 = pneg %p39
        %p218 = pneg %p63
        %p219 = pneg %p60
        %p220 = pneg %p84
        %p221 = pneg %p81
        %p222 = pneg %p110
        %p223 = pneg %p107
        %s224 = sand.u32 %s97, 1
        %s225 = scalar_lea.sflag [#allocation4], %s224
        %s226 = sand.u32 %s97, 1
        %s227 = smul.addr %s226, 1008
        %s228 = scalar_lea.vmem [#allocation8], %s227
        %s229 = smul.u32 63, %s21
        %s230 = ssub.s32 125, %s229
        %p231 = scmp.lt.s32.totalorder %s230, 63
        %s232 = scalar_select %p231, %s230, 63
        %s233 = smul.u32 8, %s232
        %s234 = smul.u32 63, %s21
        %s235 = ssub.s32 125, %s234
        %p236 = scmp.lt.s32.totalorder %s235, 63
        %s237 = scalar_select %p236, %s235, 63
        %s238 = smul.u32 8, %s237
        %s239 = smul.u32 %s238, 2
        %v240 = vld [vmem:[%s195] sm:$0xff]
        %v241 = vld [vmem:[%s195 + $0x8] sm:$0xff]
        %v242 = vld [vmem:[%s195 + $0x10] sm:$0xff]
        %v243 = vld [vmem:[%s195 + $0x18] sm:$0xff]
        %v244 = vld [vmem:[%s195 + $0x20] sm:$0xff]
        %v245 = vld [vmem:[%s195 + $0x28] sm:$0xff]
        %v246 = vld [vmem:[%s195 + $0x30] sm:$0xff]
        %v247 = vld [vmem:[%s195 + $0x38] sm:$0xff]
        %v248 = vld [vmem:[%s195 + $0x40] sm:$0xff]
        %v249 = vld [vmem:[%s195 + $0x48] sm:$0xff]
        %v250 = vld [vmem:[%s195 + $0x50] sm:$0xff]
        %v251 = vld [vmem:[%s195 + $0x58] sm:$0xff]
        %v252 = vld [vmem:[%s195 + $0x60] sm:$0xff]
        %v253 = vld [vmem:[%s195 + $0x68] sm:$0xff]
        %v254 = vld [vmem:[%s195 + $0x70] sm:$0xff]
        %v255 = vld [vmem:[%s195 + $0x78] sm:$0xff]
        %v256 = vld [vmem:[%s195 + $0x80] sm:$0xff]
        %v257 = vld [vmem:[%s195 + $0x88] sm:$0xff]
        %v258 = vld [vmem:[%s195 + $0x90] sm:$0xff]
        %v259 = vld [vmem:[%s195 + $0x98] sm:$0xff]
        %v260 = vld [vmem:[%s195 + $0xa0] sm:$0xff]
        %v261 = vld [vmem:[%s195 + $0xa8] sm:$0xff]
        %v262 = vld [vmem:[%s195 + $0xb0] sm:$0xff]
        %v263 = vld [vmem:[%s195 + $0xb8] sm:$0xff]
        %v264 = vld [vmem:[%s195 + $0xc0] sm:$0xff]
        %v265 = vld [vmem:[%s195 + $0xc8] sm:$0xff]
        %v266 = vld [vmem:[%s195 + $0xd0] sm:$0xff]
        %v267 = vld [vmem:[%s195 + $0xd8] sm:$0xff]
        %v268 = vld [vmem:[%s195 + $0xe0] sm:$0xff]
        %v269 = vld [vmem:[%s195 + $0xe8] sm:$0xff]
        %v270 = vld [vmem:[%s195 + $0xf0] sm:$0xff]
        %v271 = vld [vmem:[%s195 + $0xf8] sm:$0xff]
        %v272 = vld [vmem:[%s195 + $0x100] sm:$0xff]
        %v273 = vld [vmem:[%s195 + $0x108] sm:$0xff]
        %v274 = vld [vmem:[%s195 + $0x110] sm:$0xff]
        %v275 = vld [vmem:[%s195 + $0x118] sm:$0xff]
        %v276 = vld [vmem:[%s195 + $0x120] sm:$0xff]
        %v277 = vld [vmem:[%s195 + $0x128] sm:$0xff]
        %v278 = vld [vmem:[%s195 + $0x130] sm:$0xff]
        %v279 = vld [vmem:[%s195 + $0x138] sm:$0xff]
        %v280 = vld [vmem:[%s195 + $0x140] sm:$0xff]
        %v281 = vld [vmem:[%s195 + $0x148] sm:$0xff]
        %v282 = vld [vmem:[%s195 + $0x150] sm:$0xff]
        %v283 = vld [vmem:[%s195 + $0x158] sm:$0xff]
        %v284 = vld [vmem:[%s195 + $0x160] sm:$0xff]
        %v285 = vld [vmem:[%s195 + $0x168] sm:$0xff]
        %v286 = vld [vmem:[%s195 + $0x170] sm:$0xff]
        %v287 = vld [vmem:[%s195 + $0x178] sm:$0xff]
        %v288 = vld [vmem:[%s195 + $0x180] sm:$0xff]
        %v289 = vld [vmem:[%s195 + $0x188] sm:$0xff]
        %v290 = vld [vmem:[%s195 + $0x190] sm:$0xff]
        %v291 = vld [vmem:[%s195 + $0x198] sm:$0xff]
        %v292 = vld [vmem:[%s195 + $0x1a0] sm:$0xff]
        %v293 = vld [vmem:[%s195 + $0x1a8] sm:$0xff]
        %v294 = vld [vmem:[%s195 + $0x1b0] sm:$0xff]
        %v295 = vld [vmem:[%s195 + $0x1b8] sm:$0xff]
        %v296 = vld [vmem:[%s195 + $0x1c0] sm:$0xff]
        %v297 = vld [vmem:[%s195 + $0x1c8] sm:$0xff]
        %v298 = vld [vmem:[%s195 + $0x1d0] sm:$0xff]
        %v299 = vld [vmem:[%s195 + $0x1d8] sm:$0xff]
        %v300 = vld [vmem:[%s195 + $0x1e0] sm:$0xff]
        %v301 = vld [vmem:[%s195 + $0x1e8] sm:$0xff]
        %v302 = vld [vmem:[%s195 + $0x1f0] sm:$0xff]
        %v303 = vld [vmem:[#allocation5] sm:$0xff]
        %v304 = vld [vmem:[#allocation5 + $0x8] sm:$0xff]
        %v305 = vld [vmem:[#allocation5 + $0x10] sm:$0xff]
        %v306 = vld [vmem:[#allocation5 + $0x18] sm:$0xff]
        %v307 = vld [vmem:[#allocation5 + $0x20] sm:$0xff]
        %v308 = vld [vmem:[#allocation5 + $0x28] sm:$0xff]
        %v309 = vld [vmem:[#allocation5 + $0x30] sm:$0xff]
        %v310 = vld [vmem:[#allocation5 + $0x38] sm:$0xff]
        %v311 = vld [vmem:[#allocation5 + $0x40] sm:$0xff]
        %v312 = vld [vmem:[#allocation5 + $0x48] sm:$0xff]
        %v313 = vld [vmem:[#allocation5 + $0x50] sm:$0xff]
        %v314 = vld [vmem:[#allocation5 + $0x58] sm:$0xff]
        %v315 = vld [vmem:[#allocation5 + $0x60] sm:$0xff]
        %v316 = vld [vmem:[#allocation5 + $0x68] sm:$0xff]
        %v317 = vld [vmem:[#allocation5 + $0x70] sm:$0xff]
        %v318 = vld [vmem:[#allocation5 + $0x78] sm:$0xff]
        %v319 = vld [vmem:[#allocation5 + $0x80] sm:$0xff]
        %v320 = vld [vmem:[#allocation5 + $0x88] sm:$0xff]
        %v321 = vld [vmem:[#allocation5 + $0x90] sm:$0xff]
        %v322 = vld [vmem:[#allocation5 + $0x98] sm:$0xff]
        %v323 = vld [vmem:[#allocation5 + $0xa0] sm:$0xff]
        %v324 = vld [vmem:[#allocation5 + $0xa8] sm:$0xff]
        %v325 = vld [vmem:[#allocation5 + $0xb0] sm:$0xff]
        %v326 = vld [vmem:[#allocation5 + $0xb8] sm:$0xff]
        %v327 = vld [vmem:[#allocation5 + $0xc0] sm:$0xff]
        %v328 = vld [vmem:[#allocation5 + $0xc8] sm:$0xff]
        %v329 = vld [vmem:[#allocation5 + $0xd0] sm:$0xff]
        %v330 = vld [vmem:[#allocation5 + $0xd8] sm:$0xff]
        %v331 = vld [vmem:[#allocation5 + $0xe0] sm:$0xff]
        %v332 = vld [vmem:[#allocation5 + $0xe8] sm:$0xff]
        %v333 = vld [vmem:[#allocation5 + $0xf0] sm:$0xff]
        %v334 = vld [vmem:[#allocation5 + $0xf8] sm:$0xff]
        %v335 = vld [vmem:[#allocation7] sm:$0x3]
        %v337 = vperm.slane %v335, 0
        %v338 = vperm.slane %v335, 1
        %341 = vmatpush.msra.mxu0 %v333
        %342 = vmatpush.msra.mxu0 %v331
        %343 = vmatpush.msra.mxu0 %v329
        %344 = vmatpush.msra.mxu0 %v327
        %345 = vmatpush.msra.mxu0 %v325
        %346 = vmatpush.msra.mxu0 %v323
        %347 = vmatpush.msra.mxu0 %v321
        %348 = vmatpush.msra.mxu0 %v319
        %349 = vmatpush.msra.mxu0 %v317
        %350 = vmatpush.msra.mxu0 %v315
        %351 = vmatpush.msra.mxu0 %v313
        %352 = vmatpush.msra.mxu0 %v311
        %353 = vmatpush.msra.mxu0 %v309
        %354 = vmatpush.msra.mxu0 %v307
        %355 = vmatpush.msra.mxu0 %v305
        %356 = vmatpush.msra.mxu0 %v303
        %357 = vmatmul.f32.gmra.mxu0 %v240
        %v358 = vpop.f32.mrf.mxu0
        %v359 = vadd.f32 %v337, %v358
        %360 = vmatmul.f32.gmra.mxu0 %v241
        %v361 = vpop.f32.mrf.mxu0
        %v362 = vadd.f32 %v337, %v361
        %363 = vmatmul.f32.gmra.mxu0 %v242
        %v364 = vpop.f32.mrf.mxu0
        %v365 = vadd.f32 %v337, %v364
        %366 = vmatmul.f32.gmra.mxu0 %v243
        %v367 = vpop.f32.mrf.mxu0
        %v368 = vadd.f32 %v337, %v367
        %369 = vmatmul.f32.gmra.mxu0 %v244
        %v370 = vpop.f32.mrf.mxu0
        %v371 = vadd.f32 %v337, %v370
        %372 = vmatmul.f32.gmra.mxu0 %v245
        %v373 = vpop.f32.mrf.mxu0
        %v374 = vadd.f32 %v337, %v373
        %375 = vmatmul.f32.gmra.mxu0 %v246
        %v376 = vpop.f32.mrf.mxu0
        %v377 = vadd.f32 %v337, %v376
        %378 = vmatmul.f32.gmra.mxu0 %v247
        %v379 = vpop.f32.mrf.mxu0
        %v380 = vadd.f32 %v337, %v379
        %381 = vmatmul.f32.gmra.mxu0 %v248
        %v382 = vpop.f32.mrf.mxu0
        %v383 = vadd.f32 %v337, %v382
        %384 = vmatmul.f32.gmra.mxu0 %v249
        %v385 = vpop.f32.mrf.mxu0
        %v386 = vadd.f32 %v337, %v385
        %387 = vmatmul.f32.gmra.mxu0 %v250
        %v388 = vpop.f32.mrf.mxu0
        %v389 = vadd.f32 %v337, %v388
        %390 = vmatmul.f32.gmra.mxu0 %v251
        %v391 = vpop.f32.mrf.mxu0
        %v392 = vadd.f32 %v337, %v391
        %393 = vmatmul.f32.gmra.mxu0 %v252
        %v394 = vpop.f32.mrf.mxu0
        %v395 = vadd.f32 %v337, %v394
        %396 = vmatmul.f32.gmra.mxu0 %v253
        %v397 = vpop.f32.mrf.mxu0
        %v398 = vadd.f32 %v337, %v397
        %399 = vmatmul.f32.gmra.mxu0 %v254
        %v400 = vpop.f32.mrf.mxu0
        %v401 = vadd.f32 %v337, %v400
        %402 = vmatmul.f32.gmra.mxu0 %v255
        %v403 = vpop.f32.mrf.mxu0
        %v404 = vadd.f32 %v337, %v403
        %405 = vmatmul.f32.gmra.mxu0 %v256
        %v406 = vpop.f32.mrf.mxu0
        %v407 = vadd.f32 %v337, %v406
        %408 = vmatmul.f32.gmra.mxu0 %v257
        %v409 = vpop.f32.mrf.mxu0
        %v410 = vadd.f32 %v337, %v409
        %411 = vmatmul.f32.gmra.mxu0 %v258
        %v412 = vpop.f32.mrf.mxu0
        %v413 = vadd.f32 %v337, %v412
        %414 = vmatmul.f32.gmra.mxu0 %v259
        %v415 = vpop.f32.mrf.mxu0
        %v416 = vadd.f32 %v337, %v415
        %417 = vmatmul.f32.gmra.mxu0 %v260
        %v418 = vpop.f32.mrf.mxu0
        %v419 = vadd.f32 %v337, %v418
        %420 = vmatmul.f32.gmra.mxu0 %v261
        %v421 = vpop.f32.mrf.mxu0
        %v422 = vadd.f32 %v337, %v421
        %423 = vmatmul.f32.gmra.mxu0 %v262
        %v424 = vpop.f32.mrf.mxu0
        %v425 = vadd.f32 %v337, %v424
        %426 = vmatmul.f32.gmra.mxu0 %v263
        %v427 = vpop.f32.mrf.mxu0
        %v428 = vadd.f32 %v337, %v427
        %429 = vmatmul.f32.gmra.mxu0 %v264
        %v430 = vpop.f32.mrf.mxu0
        %v431 = vadd.f32 %v337, %v430
        %432 = vmatmul.f32.gmra.mxu0 %v265
        %v433 = vpop.f32.mrf.mxu0
        %v434 = vadd.f32 %v337, %v433
        %435 = vmatmul.f32.gmra.mxu0 %v266
        %v436 = vpop.f32.mrf.mxu0
        %v437 = vadd.f32 %v337, %v436
        %438 = vmatmul.f32.gmra.mxu0 %v267
        %v439 = vpop.f32.mrf.mxu0
        %v440 = vadd.f32 %v337, %v439
        %441 = vmatmul.f32.gmra.mxu0 %v268
        %v442 = vpop.f32.mrf.mxu0
        %v443 = vadd.f32 %v337, %v442
        %444 = vmatmul.f32.gmra.mxu0 %v269
        %v445 = vpop.f32.mrf.mxu0
        %v446 = vadd.f32 %v337, %v445
        %447 = vmatmul.f32.gmra.mxu0 %v270
        %v448 = vpop.f32.mrf.mxu0
        %v449 = vadd.f32 %v337, %v448
        %450 = vmatmul.f32.gmra.mxu0 %v271
        %v451 = vpop.f32.mrf.mxu0
        %v452 = vadd.f32 %v337, %v451
        %453 = vmatmul.f32.gmra.mxu0 %v272
        %v454 = vpop.f32.mrf.mxu0
        %v455 = vadd.f32 %v337, %v454
        %456 = vmatmul.f32.gmra.mxu0 %v273
        %v457 = vpop.f32.mrf.mxu0
        %v458 = vadd.f32 %v337, %v457
        %459 = vmatmul.f32.gmra.mxu0 %v274
        %v460 = vpop.f32.mrf.mxu0
        %v461 = vadd.f32 %v337, %v460
        %462 = vmatmul.f32.gmra.mxu0 %v275
        %v463 = vpop.f32.mrf.mxu0
        %v464 = vadd.f32 %v337, %v463
        %465 = vmatmul.f32.gmra.mxu0 %v276
        %v466 = vpop.f32.mrf.mxu0
        %v467 = vadd.f32 %v337, %v466
        %468 = vmatmul.f32.gmra.mxu0 %v277
        %v469 = vpop.f32.mrf.mxu0
        %v470 = vadd.f32 %v337, %v469
        %471 = vmatmul.f32.gmra.mxu0 %v278
        %v472 = vpop.f32.mrf.mxu0
        %v473 = vadd.f32 %v337, %v472
        %474 = vmatmul.f32.gmra.mxu0 %v279
        %v475 = vpop.f32.mrf.mxu0
        %v476 = vadd.f32 %v337, %v475
        %477 = vmatmul.f32.gmra.mxu0 %v280
        %v478 = vpop.f32.mrf.mxu0
        %v479 = vadd.f32 %v337, %v478
        %480 = vmatmul.f32.gmra.mxu0 %v281
        %v481 = vpop.f32.mrf.mxu0
        %v482 = vadd.f32 %v337, %v481
        %483 = vmatmul.f32.gmra.mxu0 %v282
        %v484 = vpop.f32.mrf.mxu0
        %v485 = vadd.f32 %v337, %v484
        %486 = vmatmul.f32.gmra.mxu0 %v283
        %v487 = vpop.f32.mrf.mxu0
        %v488 = vadd.f32 %v337, %v487
        %489 = vmatmul.f32.gmra.mxu0 %v284
        %v490 = vpop.f32.mrf.mxu0
        %v491 = vadd.f32 %v337, %v490
        %492 = vmatmul.f32.gmra.mxu0 %v285
        %v493 = vpop.f32.mrf.mxu0
        %v494 = vadd.f32 %v337, %v493
        %495 = vmatmul.f32.gmra.mxu0 %v286
        %v496 = vpop.f32.mrf.mxu0
        %v497 = vadd.f32 %v337, %v496
        %498 = vmatmul.f32.gmra.mxu0 %v287
        %v499 = vpop.f32.mrf.mxu0
        %v500 = vadd.f32 %v337, %v499
        %501 = vmatmul.f32.gmra.mxu0 %v288
        %v502 = vpop.f32.mrf.mxu0
        %v503 = vadd.f32 %v337, %v502
        %504 = vmatmul.f32.gmra.mxu0 %v289
        %v505 = vpop.f32.mrf.mxu0
        %v506 = vadd.f32 %v337, %v505
        %507 = vmatmul.f32.gmra.mxu0 %v290
        %v508 = vpop.f32.mrf.mxu0
        %v509 = vadd.f32 %v337, %v508
        %510 = vmatmul.f32.gmra.mxu0 %v291
        %v511 = vpop.f32.mrf.mxu0
        %v512 = vadd.f32 %v337, %v511
        %513 = vmatmul.f32.gmra.mxu0 %v292
        %v514 = vpop.f32.mrf.mxu0
        %v515 = vadd.f32 %v337, %v514
        %516 = vmatmul.f32.gmra.mxu0 %v293
        %v517 = vpop.f32.mrf.mxu0
        %v518 = vadd.f32 %v337, %v517
        %519 = vmatmul.f32.gmra.mxu0 %v294
        %v520 = vpop.f32.mrf.mxu0
        %v521 = vadd.f32 %v337, %v520
        %522 = vmatmul.f32.gmra.mxu0 %v295
        %v523 = vpop.f32.mrf.mxu0
        %v524 = vadd.f32 %v337, %v523
        %525 = vmatmul.f32.gmra.mxu0 %v296
        %v526 = vpop.f32.mrf.mxu0
        %v527 = vadd.f32 %v337, %v526
        %528 = vmatmul.f32.gmra.mxu0 %v297
        %v529 = vpop.f32.mrf.mxu0
        %v530 = vadd.f32 %v337, %v529
        %531 = vmatmul.f32.gmra.mxu0 %v298
        %v532 = vpop.f32.mrf.mxu0
        %v533 = vadd.f32 %v337, %v532
        %534 = vmatmul.f32.gmra.mxu0 %v299
        %v535 = vpop.f32.mrf.mxu0
        %v536 = vadd.f32 %v337, %v535
        %537 = vmatmul.f32.gmra.mxu0 %v300
        %v538 = vpop.f32.mrf.mxu0
        %v539 = vadd.f32 %v337, %v538
        %540 = vmatmul.f32.gmra.mxu0 %v301
        %v541 = vpop.f32.mrf.mxu0
        %v542 = vadd.f32 %v337, %v541
        %543 = vmatmul.f32.gmra.mxu0 %v302
        %v544 = vpop.f32.mrf.mxu0
        %v545 = vadd.f32 %v337, %v544
        %546 = vdwg.mxu0
        %547 = vmatpush.msra.mxu0 %v334
        %548 = vmatpush.msra.mxu0 %v332
        %549 = vmatpush.msra.mxu0 %v330
        %550 = vmatpush.msra.mxu0 %v328
        %551 = vmatpush.msra.mxu0 %v326
        %552 = vmatpush.msra.mxu0 %v324
        %553 = vmatpush.msra.mxu0 %v322
        %554 = vmatpush.msra.mxu0 %v320
        %555 = vmatpush.msra.mxu0 %v318
        %556 = vmatpush.msra.mxu0 %v316
        %557 = vmatpush.msra.mxu0 %v314
        %558 = vmatpush.msra.mxu0 %v312
        %559 = vmatpush.msra.mxu0 %v310
        %560 = vmatpush.msra.mxu0 %v308
        %561 = vmatpush.msra.mxu0 %v306
        %562 = vmatpush.msra.mxu0 %v304
        %563 = vmatmul.f32.gmra.mxu0 %v240
        %v564 = vpop.f32.mrf.mxu0
        %v565 = vadd.f32 %v338, %v564
        %566 = vmatmul.f32.gmra.mxu0 %v241
        %v567 = vpop.f32.mrf.mxu0
        %v568 = vadd.f32 %v338, %v567
        %569 = vmatmul.f32.gmra.mxu0 %v242
        %v570 = vpop.f32.mrf.mxu0
        %v571 = vadd.f32 %v338, %v570
        %572 = vmatmul.f32.gmra.mxu0 %v243
        %v573 = vpop.f32.mrf.mxu0
        %v574 = vadd.f32 %v338, %v573
        %575 = vmatmul.f32.gmra.mxu0 %v244
        %v576 = vpop.f32.mrf.mxu0
        %v577 = vadd.f32 %v338, %v576
        %578 = vmatmul.f32.gmra.mxu0 %v245
        %v579 = vpop.f32.mrf.mxu0
        %v580 = vadd.f32 %v338, %v579
        %581 = vmatmul.f32.gmra.mxu0 %v246
        %v582 = vpop.f32.mrf.mxu0
        %v583 = vadd.f32 %v338, %v582
        %584 = vmatmul.f32.gmra.mxu0 %v247
        %v585 = vpop.f32.mrf.mxu0
        %v586 = vadd.f32 %v338, %v585
        %587 = vmatmul.f32.gmra.mxu0 %v248
        %v588 = vpop.f32.mrf.mxu0
        %v589 = vadd.f32 %v338, %v588
        %590 = vmatmul.f32.gmra.mxu0 %v249
        %v591 = vpop.f32.mrf.mxu0
        %v592 = vadd.f32 %v338, %v591
        %593 = vmatmul.f32.gmra.mxu0 %v250
        %v594 = vpop.f32.mrf.mxu0
        %v595 = vadd.f32 %v338, %v594
        %596 = vmatmul.f32.gmra.mxu0 %v251
        %v597 = vpop.f32.mrf.mxu0
        %v598 = vadd.f32 %v338, %v597
        %599 = vmatmul.f32.gmra.mxu0 %v252
        %v600 = vpop.f32.mrf.mxu0
        %v601 = vadd.f32 %v338, %v600
        %602 = vmatmul.f32.gmra.mxu0 %v253
        %v603 = vpop.f32.mrf.mxu0
        %v604 = vadd.f32 %v338, %v603
        %605 = vmatmul.f32.gmra.mxu0 %v254
        %v606 = vpop.f32.mrf.mxu0
        %v607 = vadd.f32 %v338, %v606
        %608 = vmatmul.f32.gmra.mxu0 %v255
        %v609 = vpop.f32.mrf.mxu0
        %v610 = vadd.f32 %v338, %v609
        %611 = vmatmul.f32.gmra.mxu0 %v256
        %v612 = vpop.f32.mrf.mxu0
        %v613 = vadd.f32 %v338, %v612
        %614 = vmatmul.f32.gmra.mxu0 %v257
        %v615 = vpop.f32.mrf.mxu0
        %v616 = vadd.f32 %v338, %v615
        %617 = vmatmul.f32.gmra.mxu0 %v258
        %v618 = vpop.f32.mrf.mxu0
        %v619 = vadd.f32 %v338, %v618
        %620 = vmatmul.f32.gmra.mxu0 %v259
        %v621 = vpop.f32.mrf.mxu0
        %v622 = vadd.f32 %v338, %v621
        %623 = vmatmul.f32.gmra.mxu0 %v260
        %v624 = vpop.f32.mrf.mxu0
        %v625 = vadd.f32 %v338, %v624
        %626 = vmatmul.f32.gmra.mxu0 %v261
        %v627 = vpop.f32.mrf.mxu0
        %v628 = vadd.f32 %v338, %v627
        %629 = vmatmul.f32.gmra.mxu0 %v262
        %v630 = vpop.f32.mrf.mxu0
        %v631 = vadd.f32 %v338, %v630
        %632 = vmatmul.f32.gmra.mxu0 %v263
        %v633 = vpop.f32.mrf.mxu0
        %v634 = vadd.f32 %v338, %v633
        %635 = vmatmul.f32.gmra.mxu0 %v264
        %v636 = vpop.f32.mrf.mxu0
        %v637 = vadd.f32 %v338, %v636
        %638 = vmatmul.f32.gmra.mxu0 %v265
        %v639 = vpop.f32.mrf.mxu0
        %v640 = vadd.f32 %v338, %v639
        %641 = vmatmul.f32.gmra.mxu0 %v266
        %v642 = vpop.f32.mrf.mxu0
        %v643 = vadd.f32 %v338, %v642
        %644 = vmatmul.f32.gmra.mxu0 %v267
        %v645 = vpop.f32.mrf.mxu0
        %v646 = vadd.f32 %v338, %v645
        %647 = vmatmul.f32.gmra.mxu0 %v268
        %v648 = vpop.f32.mrf.mxu0
        %v649 = vadd.f32 %v338, %v648
        %650 = vmatmul.f32.gmra.mxu0 %v269
        %v651 = vpop.f32.mrf.mxu0
        %v652 = vadd.f32 %v338, %v651
        %653 = vmatmul.f32.gmra.mxu0 %v270
        %v654 = vpop.f32.mrf.mxu0
        %v655 = vadd.f32 %v338, %v654
        %656 = vmatmul.f32.gmra.mxu0 %v271
        %v657 = vpop.f32.mrf.mxu0
        %v658 = vadd.f32 %v338, %v657
        %659 = vmatmul.f32.gmra.mxu0 %v272
        %v660 = vpop.f32.mrf.mxu0
        %v661 = vadd.f32 %v338, %v660
        %662 = vmatmul.f32.gmra.mxu0 %v273
        %v663 = vpop.f32.mrf.mxu0
        %v664 = vadd.f32 %v338, %v663
        %665 = vmatmul.f32.gmra.mxu0 %v274
        %v666 = vpop.f32.mrf.mxu0
        %v667 = vadd.f32 %v338, %v666
        %668 = vmatmul.f32.gmra.mxu0 %v275
        %v669 = vpop.f32.mrf.mxu0
        %v670 = vadd.f32 %v338, %v669
        %671 = vmatmul.f32.gmra.mxu0 %v276
        %v672 = vpop.f32.mrf.mxu0
        %v673 = vadd.f32 %v338, %v672
        %674 = vmatmul.f32.gmra.mxu0 %v277
        %v675 = vpop.f32.mrf.mxu0
        %v676 = vadd.f32 %v338, %v675
        %677 = vmatmul.f32.gmra.mxu0 %v278
        %v678 = vpop.f32.mrf.mxu0
        %v679 = vadd.f32 %v338, %v678
        %680 = vmatmul.f32.gmra.mxu0 %v279
        %v681 = vpop.f32.mrf.mxu0
        %v682 = vadd.f32 %v338, %v681
        %683 = vmatmul.f32.gmra.mxu0 %v280
        %v684 = vpop.f32.mrf.mxu0
        %v685 = vadd.f32 %v338, %v684
        %686 = vmatmul.f32.gmra.mxu0 %v281
        %v687 = vpop.f32.mrf.mxu0
        %v688 = vadd.f32 %v338, %v687
        %689 = vmatmul.f32.gmra.mxu0 %v282
        %v690 = vpop.f32.mrf.mxu0
        %v691 = vadd.f32 %v338, %v690
        %692 = vmatmul.f32.gmra.mxu0 %v283
        %v693 = vpop.f32.mrf.mxu0
        %v694 = vadd.f32 %v338, %v693
        %695 = vmatmul.f32.gmra.mxu0 %v284
        %v696 = vpop.f32.mrf.mxu0
        %v697 = vadd.f32 %v338, %v696
        %698 = vmatmul.f32.gmra.mxu0 %v285
        %v699 = vpop.f32.mrf.mxu0
        %v700 = vadd.f32 %v338, %v699
        %701 = vmatmul.f32.gmra.mxu0 %v286
        %v702 = vpop.f32.mrf.mxu0
        %v703 = vadd.f32 %v338, %v702
        %704 = vmatmul.f32.gmra.mxu0 %v287
        %v705 = vpop.f32.mrf.mxu0
        %v706 = vadd.f32 %v338, %v705
        %707 = vmatmul.f32.gmra.mxu0 %v288
        %v708 = vpop.f32.mrf.mxu0
        %v709 = vadd.f32 %v338, %v708
        %710 = vmatmul.f32.gmra.mxu0 %v289
        %v711 = vpop.f32.mrf.mxu0
        %v712 = vadd.f32 %v338, %v711
        %713 = vmatmul.f32.gmra.mxu0 %v290
        %v714 = vpop.f32.mrf.mxu0
        %v715 = vadd.f32 %v338, %v714
        %716 = vmatmul.f32.gmra.mxu0 %v291
        %v717 = vpop.f32.mrf.mxu0
        %v718 = vadd.f32 %v338, %v717
        %719 = vmatmul.f32.gmra.mxu0 %v292
        %v720 = vpop.f32.mrf.mxu0
        %v721 = vadd.f32 %v338, %v720
        %722 = vmatmul.f32.gmra.mxu0 %v293
        %v723 = vpop.f32.mrf.mxu0
        %v724 = vadd.f32 %v338, %v723
        %725 = vmatmul.f32.gmra.mxu0 %v294
        %v726 = vpop.f32.mrf.mxu0
        %v727 = vadd.f32 %v338, %v726
        %728 = vmatmul.f32.gmra.mxu0 %v295
        %v729 = vpop.f32.mrf.mxu0
        %v730 = vadd.f32 %v338, %v729
        %731 = vmatmul.f32.gmra.mxu0 %v296
        %v732 = vpop.f32.mrf.mxu0
        %v733 = vadd.f32 %v338, %v732
        %734 = vmatmul.f32.gmra.mxu0 %v297
        %v735 = vpop.f32.mrf.mxu0
        %v736 = vadd.f32 %v338, %v735
        %737 = vmatmul.f32.gmra.mxu0 %v298
        %v738 = vpop.f32.mrf.mxu0
        %v739 = vadd.f32 %v338, %v738
        %740 = vmatmul.f32.gmra.mxu0 %v299
        %v741 = vpop.f32.mrf.mxu0
        %v742 = vadd.f32 %v338, %v741
        %743 = vmatmul.f32.gmra.mxu0 %v300
        %v744 = vpop.f32.mrf.mxu0
        %v745 = vadd.f32 %v338, %v744
        %746 = vmatmul.f32.gmra.mxu0 %v301
        %v747 = vpop.f32.mrf.mxu0
        %v748 = vadd.f32 %v338, %v747
        %749 = vmatmul.f32.gmra.mxu0 %v302
        %v750 = vpop.f32.mrf.mxu0
        %v751 = vadd.f32 %v338, %v750
        %752 = vdwg.mxu0
        %753 = vst [vmem:[%s228] sm:$0xff] %v359
        %754 = vst [vmem:[%s228 + $0x8] sm:$0xff] %v565
        %755 = vst [vmem:[%s228 + $0x10] sm:$0xff] %v362
        %756 = vst [vmem:[%s228 + $0x18] sm:$0xff] %v568
        %757 = vst [vmem:[%s228 + $0x20] sm:$0xff] %v365
        %758 = vst [vmem:[%s228 + $0x28] sm:$0xff] %v571
        %759 = vst [vmem:[%s228 + $0x30] sm:$0xff] %v368
        %760 = vst [vmem:[%s228 + $0x38] sm:$0xff] %v574
        %761 = vst [vmem:[%s228 + $0x40] sm:$0xff] %v371
        %762 = vst [vmem:[%s228 + $0x48] sm:$0xff] %v577
        %763 = vst [vmem:[%s228 + $0x50] sm:$0xff] %v374
        %764 = vst [vmem:[%s228 + $0x58] sm:$0xff] %v580
        %765 = vst [vmem:[%s228 + $0x60] sm:$0xff] %v377
        %766 = vst [vmem:[%s228 + $0x68] sm:$0xff] %v583
        %767 = vst [vmem:[%s228 + $0x70] sm:$0xff] %v380
        %768 = vst [vmem:[%s228 + $0x78] sm:$0xff] %v586
        %769 = vst [vmem:[%s228 + $0x80] sm:$0xff] %v383
        %770 = vst [vmem:[%s228 + $0x88] sm:$0xff] %v589
        %771 = vst [vmem:[%s228 + $0x90] sm:$0xff] %v386
        %772 = vst [vmem:[%s228 + $0x98] sm:$0xff] %v592
        %773 = vst [vmem:[%s228 + $0xa0] sm:$0xff] %v389
        %774 = vst [vmem:[%s228 + $0xa8] sm:$0xff] %v595
        %775 = vst [vmem:[%s228 + $0xb0] sm:$0xff] %v392
        %776 = vst [vmem:[%s228 + $0xb8] sm:$0xff] %v598
        %777 = vst [vmem:[%s228 + $0xc0] sm:$0xff] %v395
        %778 = vst [vmem:[%s228 + $0xc8] sm:$0xff] %v601
        %779 = vst [vmem:[%s228 + $0xd0] sm:$0xff] %v398
        %780 = vst [vmem:[%s228 + $0xd8] sm:$0xff] %v604
        %781 = vst [vmem:[%s228 + $0xe0] sm:$0xff] %v401
        %782 = vst [vmem:[%s228 + $0xe8] sm:$0xff] %v607
        %783 = vst [vmem:[%s228 + $0xf0] sm:$0xff] %v404
        %784 = vst [vmem:[%s228 + $0xf8] sm:$0xff] %v610
        %785 = vst [vmem:[%s228 + $0x100] sm:$0xff] %v407
        %786 = vst [vmem:[%s228 + $0x108] sm:$0xff] %v613
        %787 = vst [vmem:[%s228 + $0x110] sm:$0xff] %v410
        %788 = vst [vmem:[%s228 + $0x118] sm:$0xff] %v616
        %789 = vst [vmem:[%s228 + $0x120] sm:$0xff] %v413
        %790 = vst [vmem:[%s228 + $0x128] sm:$0xff] %v619
        %791 = vst [vmem:[%s228 + $0x130] sm:$0xff] %v416
        %792 = vst [vmem:[%s228 + $0x138] sm:$0xff] %v622
        %793 = vst [vmem:[%s228 + $0x140] sm:$0xff] %v419
        %794 = vst [vmem:[%s228 + $0x148] sm:$0xff] %v625
        %795 = vst [vmem:[%s228 + $0x150] sm:$0xff] %v422
        %796 = vst [vmem:[%s228 + $0x158] sm:$0xff] %v628
        %797 = vst [vmem:[%s228 + $0x160] sm:$0xff] %v425
        %798 = vst [vmem:[%s228 + $0x168] sm:$0xff] %v631
        %799 = vst [vmem:[%s228 + $0x170] sm:$0xff] %v428
        %800 = vst [vmem:[%s228 + $0x178] sm:$0xff] %v634
        %801 = vst [vmem:[%s228 + $0x180] sm:$0xff] %v431
        %802 = vst [vmem:[%s228 + $0x188] sm:$0xff] %v637
        %803 = vst [vmem:[%s228 + $0x190] sm:$0xff] %v434
        %804 = vst [vmem:[%s228 + $0x198] sm:$0xff] %v640
        %805 = vst [vmem:[%s228 + $0x1a0] sm:$0xff] %v437
        %806 = vst [vmem:[%s228 + $0x1a8] sm:$0xff] %v643
        %807 = vst [vmem:[%s228 + $0x1b0] sm:$0xff] %v440
        %808 = vst [vmem:[%s228 + $0x1b8] sm:$0xff] %v646
        %809 = vst [vmem:[%s228 + $0x1c0] sm:$0xff] %v443
        %810 = vst [vmem:[%s228 + $0x1c8] sm:$0xff] %v649
        %811 = vst [vmem:[%s228 + $0x1d0] sm:$0xff] %v446
        %812 = vst [vmem:[%s228 + $0x1d8] sm:$0xff] %v652
        %813 = vst [vmem:[%s228 + $0x1e0] sm:$0xff] %v449
        %814 = vst [vmem:[%s228 + $0x1e8] sm:$0xff] %v655
        %815 = vst [vmem:[%s228 + $0x1f0] sm:$0xff] %v452
        %816 = vst [vmem:[%s228 + $0x1f8] sm:$0xff] %v658
        %817 = vst [vmem:[%s228 + $0x200] sm:$0xff] %v455
        %818 = vst [vmem:[%s228 + $0x208] sm:$0xff] %v661
        %819 = vst [vmem:[%s228 + $0x210] sm:$0xff] %v458
        %820 = vst [vmem:[%s228 + $0x218] sm:$0xff] %v664
        %821 = vst [vmem:[%s228 + $0x220] sm:$0xff] %v461
        %822 = vst [vmem:[%s228 + $0x228] sm:$0xff] %v667
        %823 = vst [vmem:[%s228 + $0x230] sm:$0xff] %v464
        %824 = vst [vmem:[%s228 + $0x238] sm:$0xff] %v670
        %825 = vst [vmem:[%s228 + $0x240] sm:$0xff] %v467
        %826 = vst [vmem:[%s228 + $0x248] sm:$0xff] %v673
        %827 = vst [vmem:[%s228 + $0x250] sm:$0xff] %v470
        %828 = vst [vmem:[%s228 + $0x258] sm:$0xff] %v676
        %829 = vst [vmem:[%s228 + $0x260] sm:$0xff] %v473
        %830 = vst [vmem:[%s228 + $0x268] sm:$0xff] %v679
        %831 = vst [vmem:[%s228 + $0x270] sm:$0xff] %v476
        %832 = vst [vmem:[%s228 + $0x278] sm:$0xff] %v682
        %833 = vst [vmem:[%s228 + $0x280] sm:$0xff] %v479
        %834 = vst [vmem:[%s228 + $0x288] sm:$0xff] %v685
        %835 = vst [vmem:[%s228 + $0x290] sm:$0xff] %v482
        %836 = vst [vmem:[%s228 + $0x298] sm:$0xff] %v688
        %837 = vst [vmem:[%s228 + $0x2a0] sm:$0xff] %v485
        %838 = vst [vmem:[%s228 + $0x2a8] sm:$0xff] %v691
        %839 = vst [vmem:[%s228 + $0x2b0] sm:$0xff] %v488
        %840 = vst [vmem:[%s228 + $0x2b8] sm:$0xff] %v694
        %841 = vst [vmem:[%s228 + $0x2c0] sm:$0xff] %v491
        %842 = vst [vmem:[%s228 + $0x2c8] sm:$0xff] %v697
        %843 = vst [vmem:[%s228 + $0x2d0] sm:$0xff] %v494
        %844 = vst [vmem:[%s228 + $0x2d8] sm:$0xff] %v700
        %845 = vst [vmem:[%s228 + $0x2e0] sm:$0xff] %v497
        %846 = vst [vmem:[%s228 + $0x2e8] sm:$0xff] %v703
        %847 = vst [vmem:[%s228 + $0x2f0] sm:$0xff] %v500
        %848 = vst [vmem:[%s228 + $0x2f8] sm:$0xff] %v706
        %849 = vst [vmem:[%s228 + $0x300] sm:$0xff] %v503
        %850 = vst [vmem:[%s228 + $0x308] sm:$0xff] %v709
        %851 = vst [vmem:[%s228 + $0x310] sm:$0xff] %v506
        %852 = vst [vmem:[%s228 + $0x318] sm:$0xff] %v712
        %853 = vst [vmem:[%s228 + $0x320] sm:$0xff] %v509
        %854 = vst [vmem:[%s228 + $0x328] sm:$0xff] %v715
        %855 = vst [vmem:[%s228 + $0x330] sm:$0xff] %v512
        %856 = vst [vmem:[%s228 + $0x338] sm:$0xff] %v718
        %857 = vst [vmem:[%s228 + $0x340] sm:$0xff] %v515
        %858 = vst [vmem:[%s228 + $0x348] sm:$0xff] %v721
        %859 = vst [vmem:[%s228 + $0x350] sm:$0xff] %v518
        %860 = vst [vmem:[%s228 + $0x358] sm:$0xff] %v724
        %861 = vst [vmem:[%s228 + $0x360] sm:$0xff] %v521
        %862 = vst [vmem:[%s228 + $0x368] sm:$0xff] %v727
        %863 = vst [vmem:[%s228 + $0x370] sm:$0xff] %v524
        %864 = vst [vmem:[%s228 + $0x378] sm:$0xff] %v730
        %865 = vst [vmem:[%s228 + $0x380] sm:$0xff] %v527
        %866 = vst [vmem:[%s228 + $0x388] sm:$0xff] %v733
        %867 = vst [vmem:[%s228 + $0x390] sm:$0xff] %v530
        %868 = vst [vmem:[%s228 + $0x398] sm:$0xff] %v736
        %869 = vst [vmem:[%s228 + $0x3a0] sm:$0xff] %v533
        %870 = vst [vmem:[%s228 + $0x3a8] sm:$0xff] %v739
        %871 = vst [vmem:[%s228 + $0x3b0] sm:$0xff] %v536
        %872 = vst [vmem:[%s228 + $0x3b8] sm:$0xff] %v742
        %873 = vst [vmem:[%s228 + $0x3c0] sm:$0xff] %v539
        %874 = vst [vmem:[%s228 + $0x3c8] sm:$0xff] %v745
        %875 = vst [vmem:[%s228 + $0x3d0] sm:$0xff] %v542
        %876 = vst [vmem:[%s228 + $0x3d8] sm:$0xff] %v748
        %877 = vst [vmem:[%s228 + $0x3e0] sm:$0xff] %v545
        %878 = vst [vmem:[%s228 + $0x3e8] sm:$0xff] %v751
        %s879 = sand.u32 %s97, 1
        %s880 = scalar_lea.sflag [#allocation4], %s879
        %s881 = sand.u32 %s97, 1
        %s882 = smul.addr %s881, 1008
        %s883 = scalar_lea.vmem [#allocation8], %s882
        // Predicated region
        $region45: #{tpu_custom_call.1} parent=31 // pred_check
          %p884 = pneg %p107
        $region46: #{tpu_custom_call.1} parent=31 // pred_check_branch
          %886 = sbr.rel (%p884) target = $region48
        $region47: #{tpu_custom_call.1} parent=31 // pred_region
          %s887 = smul.u32 63, %s21
          %s888 = ssub.s32 125, %s887
          %p889 = scmp.lt.s32.totalorder %s888, 63
          %s890 = scalar_select %p889, %s888, 63
          %s891 = smul.u32 8, %s890
          %s892 = smul.u32 %s891, 2
          %s893 = ssub.s32 1008, %s892
          %s894 = sshll.u32 %s893, 4
          %895 = vsyncadd %s880, %s894
          %p896 = scmp.ne.s32.totalorder 0, %s892
          %s897 = smul.addr %s887, 2
          %s898 = smul.addr %s897, 8
          %s899 = scalar_lea.hbm %s3, %s898
          %s900 = smul.u32 16, %s890
          %s901 = sshll.u32 %s883, 4
          %s902 = int_to_ptr.vmem [resolvable:$true] %s901
          %s903 = sshll.u32 %s899, 4
          %s904 = int_to_ptr.hbm [resolvable:$true] %s903
          %s905 = sshll.u32 %s900, 4
          %909 = dma.vmem_to_hbm [thread:$0]  (%p896), %s902, %s905, %s904, %s880, 256, 256, 16
        $region48: #{tpu_custom_call.1} parent=31 // pred_fallthru
          _
      $region32: #{tpu_custom_call.1} parent=5 // pred_fallthru
        _
      %p910 = scmp.le.s32.totalorder 2, %s16
      // Predicated region
      $region49: #{tpu_custom_call.1} parent=5 // pred_check
        %p911 = pneg %p910
      $region50: #{tpu_custom_call.1} parent=5 // pred_check_branch
        %913 = sbr.rel (%p911) target = $region52
      $region51: #{tpu_custom_call.1} parent=5 // pred_region
        %s914 = ssub.s32 %s16, 2
        // Predicated region
        $region53: #{tpu_custom_call.1} parent=51 // pred_check
          %p915 = pneg %p113
        $region54: #{tpu_custom_call.1} parent=51 // pred_check_branch
          %917 = sbr.rel (%p915) target = $region56
        $region55: #{tpu_custom_call.1} parent=51 // pred_region
          %s918 = sand.u32 %s98, 1
          %s919 = scalar_lea.sflag [#allocation4], %s918
          %s920 = sand.u32 %s98, 1
          %s921 = smul.addr %s920, 1008
          %s922 = scalar_lea.vmem [#allocation8], %s921
          %924 = dma.done %s919, 16128
        $region56: #{tpu_custom_call.1} parent=51 // pred_fallthru
          _
      $region52: #{tpu_custom_call.1} parent=5 // pred_fallthru
        _
    $region6: #{tpu_custom_call.1} parent=1 // loop_footer
      %s20 = sadd.s32 1, %s16
    $region7: #{tpu_custom_call.1} parent=1 // loop_footer_branch
      %15 = sbr.rel target = $region3
    $region8: #{tpu_custom_call.1} parent=1 // loop_exit
      _
    %925 = vsyncpa [#allocation3], 1
    %s926 = scalar_lea.sflag [#allocation3], 1
    %927 = vsyncpa %s926, 1
    %928 = vsyncpa [#allocation6], 1
    %929 = vsyncpa [#allocation4], 1
    %s930 = scalar_lea.sflag [#allocation4], 1
    %931 = vsyncpa %s930, 1

</llo_original>
